<compile_context>
chip_gen: v7x
topology: tpu7x:2x2x1
jax: 0.10.0
libtpu: 0.0.40
codegen_flags: <defaults>
</compile_context>

<pallas_src>
import jax
import jax.numpy as jnp
from jax.experimental import pallas as pl
from jax.experimental.pallas import tpu as pltpu

_TARGET_CHUNK_BYTES = 4 << 20   # ~4 MiB per DMA chunk (size only controls how
                                # many DMAs are in flight; no VMEM is used).
_MAX_OUTSTANDING = 8            # cap on simultaneously outstanding DMAs.


def _make_dma_copy_kernel(chunks):
    """Build a kernel that copies x -> o entirely with HBM->HBM DMAs.

    `chunks` is either None (single whole-array DMA) or a static tuple of
    (offset, size) slices along axis 0, each with its own DMA semaphore.
    """

    def kernel(x_hbm, o_hbm, sems):
        if chunks is None:
            descs = [pltpu.make_async_copy(x_hbm, o_hbm, sems.at[0])]
        else:
            descs = [
                pltpu.make_async_copy(
                    x_hbm.at[pl.ds(off, sz)],
                    o_hbm.at[pl.ds(off, sz)],
                    sems.at[idx],
                )
                for idx, (off, sz) in enumerate(chunks)
            ]
        # Issue every chunk first (multiple outstanding DMAs), then wait.
        for d in descs:
            d.start()
        for d in descs:
            d.wait()

    return kernel


def _copy_cost(x):
    nbytes = x.size * jnp.dtype(x.dtype).itemsize
    return pl.CostEstimate(flops=0, transcendentals=0, bytes_accessed=2 * nbytes)


def _identity_copy_dma(x, num_chunks=None):
    """Materialize a copy of `x` via chunked HBM->HBM DMA (no VMEM, no reshape)."""
    nbytes = x.size * jnp.dtype(x.dtype).itemsize

    if x.ndim == 0:
        chunks = None
        n_sems = 1
    else:
        d0 = x.shape[0]
        if num_chunks is None:
            num_chunks = min(
                _MAX_OUTSTANDING, d0, max(1, pl.cdiv(nbytes, _TARGET_CHUNK_BYTES))
            )
        num_chunks = max(1, min(int(num_chunks), d0))
        if num_chunks == 1:
            # TODO(synk): for huge arrays with a leading dim of 1, chunk along
            # an inner axis instead to keep several DMA engines busy.
            chunks = None
            n_sems = 1
        else:
            rows = pl.cdiv(d0, num_chunks)
            chunk_list = []
            off = 0
            while off < d0:
                sz = min(rows, d0 - off)
                chunk_list.append((off, sz))
                off += sz
            chunks = tuple(chunk_list)
            n_sems = len(chunks)

    return pl.pallas_call(
        _make_dma_copy_kernel(chunks),
        out_shape=jax.ShapeDtypeStruct(x.shape, x.dtype),
        in_specs=[pl.BlockSpec(memory_space=pl.ANY)],
        out_specs=pl.BlockSpec(memory_space=pl.ANY),
        scratch_shapes=[pltpu.SemaphoreType.DMA((n_sems,))],
        cost_estimate=_copy_cost(x),
    )(x)


def identity_map(x, *args, materialize_copy=False, **kwargs):
    """Pallas implementation of IdentityMap.forward(x) -> x.

    Default path returns `x` untouched (identity has zero FLOPs, so the optimal
    kernel is no kernel).  Set materialize_copy=True to force a fresh buffer
    via the chunked HBM->HBM DMA copy kernel.
    """
    if not materialize_copy:
        return x
    if x.size == 0:
        return x
    return _identity_copy_dma(x)


# The module has no parameters; its `config` property is metadata only.
IDENTITY_MAP_CONFIG = {"mm_projector_type": "identity"}


if __name__ == "__main__":
    key = jax.random.PRNGKey(0)
    # Shape consistent with a projector input: (batch, seq, hidden).
    x = jax.random.normal(key, (2, 8, 32), dtype=jnp.float32)

    # Optimal path (matches the nn.Module semantics exactly): no kernel, no copy.
    y_fast = identity_map(x)
    assert y_fast is x

    # Forced-copy path exercises the HBM->HBM DMA kernel (single chunk here).
    y = identity_map(x, materialize_copy=True)
    jax.block_until_ready(y)
    assert y.shape == x.shape and y.dtype == x.dtype
    assert bool(jnp.array_equal(y, x))

    # Multi-chunk path: two outstanding DMAs along the leading axis.
    y2 = _identity_copy_dma(x, num_chunks=2)
    jax.block_until_ready(y2)
    assert y2.shape == x.shape and y2.dtype == x.dtype
    assert bool(jnp.array_equal(y2, x))

    # Arbitrary non-128-divisible shape: no reshape, no VMEM block, just DMA.
    x_odd = jax.random.normal(jax.random.PRNGKey(1), (3, 5, 7), dtype=jnp.float32)
    y_odd = identity_map(x_odd, materialize_copy=True)
    jax.block_until_ready(y_odd)
    assert bool(jnp.array_equal(y_odd, x_odd))

    # Sub-32-bit dtype (bf16) through the same path.
    x_bf16 = jax.random.normal(jax.random.PRNGKey(2), (2, 8, 128), dtype=jnp.bfloat16)
    y_bf16 = identity_map(x_bf16, materialize_copy=True)
    jax.block_until_ready(y_bf16)
    assert bool(jnp.array_equal(y_bf16, x_bf16))

    print("KERNEL_OK")
</pallas_src>

<mosaic_0001>
module attributes {stable_mosaic.version = 11 : i64} {
  func.func @kernel(%arg0: memref<2x8x32xf32, #tpu.memory_space<any>>, %arg1: memref<2x8x32xf32, #tpu.memory_space<any>>, %arg2: memref<1x!tpu.dma_semaphore, #tpu.memory_space<semaphore_mem>>) attributes {dimension_semantics = [], scalar_prefetch = 0 : i64, scratch_operands = 1 : i64, tpu.core_type = #tpu.core_type<tc>} {
    %c0_i32 = arith.constant 0 : i32
    %0 = tpu.memref_slice %arg2[%c0_i32] : memref<1x!tpu.dma_semaphore, #tpu.memory_space<semaphore_mem>> -> memref<1x!tpu.dma_semaphore, #tpu.memory_space<semaphore_mem>>
    %1 = tpu.memref_squeeze %0 : memref<1x!tpu.dma_semaphore, #tpu.memory_space<semaphore_mem>> -> memref<!tpu.dma_semaphore, #tpu.memory_space<semaphore_mem>>
    tpu.enqueue_dma source(%arg0 : memref<2x8x32xf32, #tpu.memory_space<any>>) target(%arg1 : memref<2x8x32xf32, #tpu.memory_space<any>>) target_semaphore(%1 : memref<!tpu.dma_semaphore, #tpu.memory_space<semaphore_mem>>)
    %c0_i32_0 = arith.constant 0 : i32
    %2 = tpu.memref_slice %arg2[%c0_i32_0] : memref<1x!tpu.dma_semaphore, #tpu.memory_space<semaphore_mem>> -> memref<1x!tpu.dma_semaphore, #tpu.memory_space<semaphore_mem>>
    %3 = tpu.memref_squeeze %2 : memref<1x!tpu.dma_semaphore, #tpu.memory_space<semaphore_mem>> -> memref<!tpu.dma_semaphore, #tpu.memory_space<semaphore_mem>>
    tpu.wait_dma2 semaphore(%3 : memref<!tpu.dma_semaphore, #tpu.memory_space<semaphore_mem>>) src(%arg0 : memref<2x8x32xf32, #tpu.memory_space<any>>) dst(%arg1 : memref<2x8x32xf32, #tpu.memory_space<any>>)
    return
  }
}

</mosaic_0001>

<llo_original>
// kernel: tpu_custom_call.1
$region0: #{tpu_custom_call.1}
  #allocation0 [shape = 'u32[]', space=smem, size = 0x4, offset = 0x4, fixed_abs, tag = 'smem constant byte address 0x4 - core index']
  #allocation1 [shape = 'u32[144,128]{1,0:T(1,128)}', space=vmem, size = 0x12000, scoped, tag = 'internal scratch']
  #allocation2 [shape = 's32[1]{0}', space=sflag, size = 0x4, scoped, tag = 'scratch operand']
  #allocation3 [shape = 's32[]', space=sflag, size = 0x4, offset = 0, fixed_abs, tag = 'sflag constant byte address 0x0 - dummy sync flag']
  #allocation4 [shape = 'u32[0]{0}', space=smem, size = 0, offset = 0, fixed_abs, tag = 'smem constant byte address 0x0 - null']
  %s0 = inlined_call_operand.hbm [shape: f32[2,8,32], index: 0, kind: input, shape index: {}]
  %s1 = inlined_call_operand.hbm [shape: f32[2,8,32], index: 1, kind: output, shape index: {}]
  %s2 = sld [smem:[#allocation0]]
  $region2: #{tpu_custom_call.1} parent=0
    _
  %s4 = ssub.s32 1, %s2
  %s5 = scalar_select 0, %s4, %s2
  %s7 = sshll.u32 1, 14
  %s8 = sxor.u32 4294967295, %s7
  %s11 = sshll.u32 3, 24
  %s12 = sxor.u32 4294967295, %s11
  %s13 = sand.u32 0, %s12
  %s15 = sor.u32 %s13, 0
  %18 = dma.general %s0, 256, %s1, [#allocation2], [#allocation3], [#allocation4], %s15, 0
  %s19 = smul.u32 2, 8
  %s20 = smul.u32 %s19, 1
  %s21 = sshll.u32 %s20, 4
  %22 = dma.done [#allocation2], %s21
  %23 = vsyncmov [#allocation2]
  %s24 = vpop.sfrf %23
  %p25 = scmp.eq.s32.totalorder %s24, 0
  %p26 = pneg %p25
  %28 = shalt.err (%p26)

</llo_original>
